<compile_context>
chip_gen: v7x
topology: tpu7x:2x2x1
jax: 0.10.0
libtpu: 0.0.40
codegen_flags: <defaults>
</compile_context>

<pallas_src>
import jax
import jax.numpy as jnp
from jax.experimental import pallas as pl
from jax.experimental.pallas import tpu as pltpu


def _round_up(x, m):
    return ((x + m - 1) // m) * m


def _make_mc_ce_kernel(num_samples, inv_s, needs_mask):
    """Kernel factory; S, 1/S and the padding-mask flag are trace-time constants."""

    def kernel(tgt_ref, m_ref, sk_ref, u_ref, out_ref, mrun_ref, lrun_ref, pick_ref):
        c = pl.program_id(1)            # class block
        s = pl.program_id(2)            # sample block (fastest axis)
        nc = pl.num_programs(1)
        ns = pl.num_programs(2)

        tb, tc = m_ref.shape
        ts = u_ref.shape[0]

        m = m_ref[...]                  # (tb, tc) f32 mean-logit tile
        sk = sk_ref[...]                # (tb, tc) f32 sqrt(variance) tile
        u = u_ref[...]                  # (ts, tc) f32 noise tile

        # One-hot of the targets for *this* class block, built on the fly
        # (no persistent (B, C) mask in VMEM).
        col = jax.lax.broadcasted_iota(jnp.int32, (tb, tc), 1) + c * tc
        onehot = (col == tgt_ref[...]).astype(jnp.float32)          # (tb, tc)

        # Perturbed logits: x[t, b, j] = m[b, j] + sqrt(k)[b, j] * u[t, j]
        x = m[None, :, :] + sk[None, :, :] * u[:, None, :]          # (ts, tb, tc)
        x_max = jnp.max(x, axis=-1)                                 # (ts, tb)

        # Target-logit contribution of this class block (the target class falls
        # in exactly one block).  Sample-dependent part on the MXU.
        m_pick = jnp.sum(onehot * m, axis=-1)[None, :]              # (1, tb)
        u_pick = jnp.einsum("tc,bc->tb", u, onehot * sk,
                            preferred_element_type=jnp.float32)     # (ts, tb)
        pick_c = m_pick + u_pick                                    # (ts, tb)

        # ---- online (flash-style) log-sum-exp over the class axis ----------
        @pl.when(c == 0)
        def _():
            mrun_ref[s] = jnp.full((ts, tb), jnp.finfo(jnp.float32).min, jnp.float32)
            lrun_ref[s] = jnp.zeros((ts, tb), jnp.float32)
            pick_ref[s] = jnp.zeros((ts, tb), jnp.float32)

        m_prev = mrun_ref[s]
        m_new = jnp.maximum(m_prev, x_max)
        l_new = (lrun_ref[s] * jnp.exp(m_prev - m_new)
                 + jnp.sum(jnp.exp(x - m_new[:, :, None]), axis=-1))
        mrun_ref[s] = m_new
        lrun_ref[s] = l_new
        pick_ref[s] = pick_ref[s] + pick_c

        # ---- last class block: fold this sample block into the output ------
        @pl.when((c == nc - 1) & (s == 0))
        def _():
            out_ref[...] = jnp.zeros_like(out_ref)

        @pl.when(c == nc - 1)
        def _():
            lse = mrun_ref[s] + jnp.log(lrun_ref[s])                 # (ts, tb)
            contrib = lse - pick_ref[s]
            if needs_mask:                                           # padded samples
                row = jax.lax.broadcasted_iota(jnp.int32, (ts, tb), 0) + s * ts
                contrib = jnp.where(row < num_samples, contrib, 0.0)
            acc = out_ref[...] + jnp.sum(contrib, axis=0, keepdims=True)   # (1, tb)
            out_ref[...] = jnp.where(s == ns - 1, acc * inv_s, acc)

    return kernel


def var_mc_cross_entropy(m, k, target, u, *, tb=None, tc=None, ts=16):
    """Monte-Carlo cross entropy.

    m, k : [B, C] logit mean / variance, target: [B] int labels,
    u    : [S, C] standard-normal draws shared across the batch.
    Returns per-example losses [B] (f32).
    """
    B, C = m.shape
    S = u.shape[0]

    m = m.astype(jnp.float32)
    sk = jnp.sqrt(k.astype(jnp.float32))   # sqrt(k) done in the wrapper: k itself
    u = u.astype(jnp.float32)              # never occupies VMEM, no sk scratch
    tgt = target.astype(jnp.int32).reshape(B, 1)

    # --- class axis: lane-pad and tile --------------------------------------
    cp_lane = _round_up(C, 128)
    if tc is None:
        tc = min(512, cp_lane)
    tc = min(_round_up(tc, 128), cp_lane)
    Cp = _round_up(C, tc)
    nc = Cp // tc

    # --- sample axis: sublane-pad and tile -----------------------------------
    ts = min(ts, _round_up(S, 8))
    ts = _round_up(ts, 8)
    Sp = _round_up(S, ts)
    ns = Sp // ts

    # --- batch axis: single resident block if small, else 128-multiples ------
    if tb is None:
        tb = B if B <= 256 else 128
    if tb >= B:
        tb, Bp = B, B
    else:
        tb = _round_up(tb, 128)            # multi-block: lane-dense (1, tb) out tiles
        Bp = _round_up(B, tb)
    nb = Bp // tb

    # --- padding (class cols of the mean -> -1e30 so exp underflows to 0) ----
    if Cp != C:
        m = jnp.pad(m, ((0, 0), (0, Cp - C)), constant_values=-1e30)
        sk = jnp.pad(sk, ((0, 0), (0, Cp - C)))
        u = jnp.pad(u, ((0, 0), (0, Cp - C)))
    if Sp != S:
        u = jnp.pad(u, ((0, Sp - S), (0, 0)))
    if Bp != B:
        m = jnp.pad(m, ((0, Bp - B), (0, 0)))
        sk = jnp.pad(sk, ((0, Bp - B), (0, 0)))
        tgt = jnp.pad(tgt, ((0, Bp - B), (0, 0)))

    kernel = _make_mc_ce_kernel(S, 1.0 / S, (S % ts) != 0)

    cost = pl.CostEstimate(
        flops=int(6 * Sp * Bp * Cp),
        transcendentals=int(Sp * Bp * Cp),
        bytes_accessed=int(4 * (2 * Bp * Cp + nb * Sp * Cp + 2 * Bp)),
    )
    buf_bytes = 4 * (2 * 2 * tb * tc + 2 * ts * tc + 3 * Sp * tb + 4 * tb)
    tmp_bytes = 4 * 4 * ts * tb * tc        # headroom for (ts, tb, tc) temporaries
    vmem_limit = int(min(48 * 1024 * 1024,
                         max(32 * 1024 * 1024, 2 * (buf_bytes + tmp_bytes))))

    out = pl.pallas_call(
        kernel,
        out_shape=jax.ShapeDtypeStruct((1, Bp), jnp.float32),
        grid_spec=pltpu.PrefetchScalarGridSpec(
            num_scalar_prefetch=0,
            # batch blocks independent ("parallel": feeds v7x's 2nd TensorCore);
            # class (online LSE) and sample (mean) axes are reductions; with the
            # sample axis innermost each (b, c) m / sqrt(k) tile is DMA'd once.
            grid=(nb, nc, ns),
            in_specs=[
                pl.BlockSpec((tb, 1), lambda b, c, s: (b, 0)),     # targets
                pl.BlockSpec((tb, tc), lambda b, c, s: (b, c)),    # mean tile
                pl.BlockSpec((tb, tc), lambda b, c, s: (b, c)),    # sqrt(var) tile
                pl.BlockSpec((ts, tc), lambda b, c, s: (s, c)),    # noise tile
            ],
            out_specs=pl.BlockSpec((1, tb), lambda b, c, s: (0, b)),  # lane-dense acc
            scratch_shapes=[
                pltpu.VMEM((ns, ts, tb), jnp.float32),   # running max
                pltpu.VMEM((ns, ts, tb), jnp.float32),   # running sum-exp
                pltpu.VMEM((ns, ts, tb), jnp.float32),   # accumulated target logit
            ],
        ),
        compiler_params=pltpu.CompilerParams(
            dimension_semantics=("parallel", "arbitrary", "arbitrary"),
            vmem_limit_bytes=vmem_limit,
        ),
        cost_estimate=cost,
    )(tgt, m, sk, u)
    return out[0, :B]


def var_monte_carlo_ce_forward(input_pair, target, num_samples, key):
    """Mirror of VarMonteCarloCrossEntropyLoss.forward (per-example losses)."""
    m, k = input_pair
    C = m.shape[-1]
    if k is None:
        # TODO(synk): reference `cross_entropy` in the source module is unresolved;
        # keep per-example (reduction='none') semantics, consistent with the MC
        # branch.  No ignore_index handling (the module never uses it).
        u = jnp.zeros((1, C), jnp.float32)
        return var_mc_cross_entropy(m, jnp.zeros_like(m), target, u)
    u = jax.random.normal(key, (num_samples, C), dtype=jnp.float32)  # == randn(S, 1, C)
    return var_mc_cross_entropy(m, k, target, u)


def _reference(m, k, target, u):
    x = m[None, :, :] + jnp.sqrt(k)[None, :, :] * u[:, None, :]       # (S, B, C)
    lse = jax.nn.logsumexp(x, axis=-1)                                # (S, B)
    idx = jnp.broadcast_to(target[None, :, None], x.shape[:2] + (1,))
    picked = jnp.take_along_axis(x, idx, axis=-1)[..., 0]             # (S, B)
    return (lse - picked).mean(0)                                     # (B,)


if __name__ == "__main__":
    key = jax.random.PRNGKey(0)
    k_m, k_v, k_t, k_u, k_m2, k_v2, k_t2, k_u2 = jax.random.split(key, 8)

    # Case 1: exercises class-blocking with lane padding (nc=3), sample-block
    # accumulation (ns=2) and padded-sample masking (S % ts != 0).
    B, C, S = 8, 320, 12
    m = jax.random.normal(k_m, (B, C), dtype=jnp.float32)
    kvar = jax.nn.softplus(jax.random.normal(k_v, (B, C), dtype=jnp.float32))
    target = jax.random.randint(k_t, (B,), 0, C, dtype=jnp.int32)
    u = jax.random.normal(k_u, (S, C), dtype=jnp.float32)

    out = jax.block_until_ready(var_mc_cross_entropy(m, kvar, target, u, tc=128, ts=8))
    ref = _reference(m, kvar, target, u)
    assert out.shape == (B,)
    assert jnp.allclose(out, ref, atol=1e-4, rtol=1e-4), (out, ref)

    # Case 2: exercises the parallel batch-block axis (nb=2, lane-dense out tiles).
    B2, C2, S2 = 256, 128, 8
    m2 = jax.random.normal(k_m2, (B2, C2), dtype=jnp.float32)
    kvar2 = jax.nn.softplus(jax.random.normal(k_v2, (B2, C2), dtype=jnp.float32))
    target2 = jax.random.randint(k_t2, (B2,), 0, C2, dtype=jnp.int32)
    u2 = jax.random.normal(k_u2, (S2, C2), dtype=jnp.float32)

    out2 = jax.block_until_ready(var_mc_cross_entropy(m2, kvar2, target2, u2, tb=128))
    ref2 = _reference(m2, kvar2, target2, u2)
    assert jnp.allclose(out2, ref2, atol=1e-4, rtol=1e-4), (out2, ref2)

    # Case 3: deterministic fallback (k is None) -> plain per-example CE.
    ce = jax.block_until_ready(var_monte_carlo_ce_forward((m, None), target, 4, k_u))
    ce_ref = jax.nn.logsumexp(m, axis=-1) - jnp.take_along_axis(m, target[:, None], axis=-1)[:, 0]
    assert jnp.allclose(ce, ce_ref, atol=1e-4, rtol=1e-4), (ce, ce_ref)

    print("KERNEL_OK")
</pallas_src>

<mosaic_0001>
module attributes {stable_mosaic.version = 11 : i64} {
  func.func @kernel(%arg0: i32, %arg1: i32, %arg2: i32, %arg3: memref<8x1xi32, #tpu.memory_space<vmem>>, %arg4: memref<8x128xf32, #tpu.memory_space<vmem>>, %arg5: memref<8x128xf32, #tpu.memory_space<vmem>>, %arg6: memref<8x128xf32, #tpu.memory_space<vmem>>, %arg7: memref<1x8xf32, #tpu.memory_space<vmem>>, %arg8: memref<2x8x8xf32, #tpu.memory_space<vmem>>, %arg9: memref<2x8x8xf32, #tpu.memory_space<vmem>>, %arg10: memref<2x8x8xf32, #tpu.memory_space<vmem>>) attributes {dimension_semantics = [#tpu.dimension_semantics<parallel>, #tpu.dimension_semantics<arbitrary>, #tpu.dimension_semantics<arbitrary>], iteration_bounds = array<i64: 1, 3, 2>, scalar_prefetch = 0 : i64, scratch_operands = 3 : i64, tpu.core_type = #tpu.core_type<tc>, window_params = [{transform_indices = @transform_0, window_bounds = array<i64: 8, 1>}, {transform_indices = @transform_1, window_bounds = array<i64: 8, 128>}, {transform_indices = @transform_2, window_bounds = array<i64: 8, 128>}, {transform_indices = @transform_3, window_bounds = array<i64: 8, 128>}, {transform_indices = @transform_4, window_bounds = array<i64: 1, 8>}]} {
    %c0 = arith.constant 0 : index
    %c0_0 = arith.constant 0 : index
    %0 = vector.load %arg4[%c0, %c0_0] : memref<8x128xf32, #tpu.memory_space<vmem>>, vector<8x128xf32>
    %c0_1 = arith.constant 0 : index
    %c0_2 = arith.constant 0 : index
    %1 = vector.load %arg5[%c0_1, %c0_2] : memref<8x128xf32, #tpu.memory_space<vmem>>, vector<8x128xf32>
    %c0_3 = arith.constant 0 : index
    %c0_4 = arith.constant 0 : index
    %2 = vector.load %arg6[%c0_3, %c0_4] : memref<8x128xf32, #tpu.memory_space<vmem>>, vector<8x128xf32>
    %3 = tpu.iota {dimensions = array<i32: 1>} : vector<8x128xi32>
    %c128_i32 = arith.constant 128 : i32
    %4 = arith.muli %arg1, %c128_i32 : i32
    %5 = vector.broadcast %4 : i32 to vector<8x128xi32>
    %6 = arith.addi %3, %5 : vector<8x128xi32>
    %c0_5 = arith.constant 0 : index
    %c0_6 = arith.constant 0 : index
    %7 = vector.load %arg3[%c0_5, %c0_6] : memref<8x1xi32, #tpu.memory_space<vmem>>, vector<8x1xi32>
    %8 = vector.broadcast %7 : vector<8x1xi32> to vector<8x128xi32>
    %9 = arith.cmpi eq, %6, %8 : vector<8x128xi32>
    %10 = arith.extui %9 : vector<8x128xi1> to vector<8x128xi32>
    %11 = arith.sitofp %10 : vector<8x128xi32> to vector<8x128xf32>
    %12 = vector.shape_cast %0 : vector<8x128xf32> to vector<1x8x128xf32>
    %13 = vector.shape_cast %1 : vector<8x128xf32> to vector<1x8x128xf32>
    %14 = vector.shape_cast %2 : vector<8x128xf32> to vector<8x1x128xf32>
    %15 = vector.broadcast %13 : vector<1x8x128xf32> to vector<8x8x128xf32>
    %16 = vector.broadcast %14 : vector<8x1x128xf32> to vector<8x8x128xf32>
    %17 = arith.mulf %15, %16 : vector<8x8x128xf32>
    %18 = vector.broadcast %12 : vector<1x8x128xf32> to vector<8x8x128xf32>
    %19 = arith.addf %18, %17 : vector<8x8x128xf32>
    %cst = arith.constant dense<0xFF800000> : vector<8x8xf32>
    %20 = vector.multi_reduction <maximumf>, %19, %cst [2] : vector<8x8x128xf32> to vector<8x8xf32>
    %21 = arith.mulf %11, %0 : vector<8x128xf32>
    %cst_7 = arith.constant dense<0.000000e+00> : vector<8xf32>
    %22 = vector.multi_reduction <add>, %21, %cst_7 [1] : vector<8x128xf32> to vector<8xf32>
    %23 = vector.shape_cast %22 : vector<8xf32> to vector<1x8xf32>
    %24 = arith.mulf %11, %1 : vector<8x128xf32>
    "tpu.trace_start"() <{level = 10 : i32, message = "tc,bc->tb"}> : () -> ()
    %cst_8 = arith.constant dense<0.000000e+00> : vector<8x8xf32>
    %25 = tpu.matmul %2, %24, %cst_8 {dimension_numbers = #tpu.dot_dimension_numbers<[1], [1], [0], [0], [0, 0, 1, 0], [], []>} : vector<8x128xf32>, vector<8x128xf32>, vector<8x8xf32> -> vector<8x8xf32>
    "tpu.trace_stop"() : () -> ()
    %26 = vector.broadcast %23 : vector<1x8xf32> to vector<8x8xf32>
    %27 = arith.addf %26, %25 : vector<8x8xf32>
    %c0_i32 = arith.constant 0 : i32
    %28 = arith.cmpi eq, %arg1, %c0_i32 : i32
    %29 = arith.extui %28 : i1 to i32
    %c0_i32_9 = arith.constant 0 : i32
    %30 = arith.cmpi ne, %29, %c0_i32_9 : i32
    scf.if %30 {
      %cst_27 = arith.constant -3.40282347E+38 : f32
      %71 = vector.broadcast %cst_27 : f32 to vector<8x8xf32>
      %72 = arith.index_cast %arg2 : i32 to index
      %c0_28 = arith.constant 0 : index
      %c0_29 = arith.constant 0 : index
      %73 = vector.load %arg8[%72, %c0_28, %c0_29] : memref<2x8x8xf32, #tpu.memory_space<vmem>>, vector<1x8x8xf32>
      %74 = vector.shape_cast %73 : vector<1x8x8xf32> to vector<8x8xf32>
      %75 = vector.shape_cast %71 : vector<8x8xf32> to vector<1x8x8xf32>
      tpu.vector_store %arg8[%72, %c0_28, %c0_29], %75 {strides = array<i32>} : memref<2x8x8xf32, #tpu.memory_space<vmem>>, vector<1x8x8xf32>,
      %cst_30 = arith.constant 0.000000e+00 : f32
      %76 = vector.broadcast %cst_30 : f32 to vector<8x8xf32>
      %77 = arith.index_cast %arg2 : i32 to index
      %c0_31 = arith.constant 0 : index
      %c0_32 = arith.constant 0 : index
      %78 = vector.load %arg9[%77, %c0_31, %c0_32] : memref<2x8x8xf32, #tpu.memory_space<vmem>>, vector<1x8x8xf32>
      %79 = vector.shape_cast %78 : vector<1x8x8xf32> to vector<8x8xf32>
      %80 = vector.shape_cast %76 : vector<8x8xf32> to vector<1x8x8xf32>
      tpu.vector_store %arg9[%77, %c0_31, %c0_32], %80 {strides = array<i32>} : memref<2x8x8xf32, #tpu.memory_space<vmem>>, vector<1x8x8xf32>,
      %cst_33 = arith.constant 0.000000e+00 : f32
      %81 = vector.broadcast %cst_33 : f32 to vector<8x8xf32>
      %82 = arith.index_cast %arg2 : i32 to index
      %c0_34 = arith.constant 0 : index
      %c0_35 = arith.constant 0 : index
      %83 = vector.load %arg10[%82, %c0_34, %c0_35] : memref<2x8x8xf32, #tpu.memory_space<vmem>>, vector<1x8x8xf32>
      %84 = vector.shape_cast %83 : vector<1x8x8xf32> to vector<8x8xf32>
      %85 = vector.shape_cast %81 : vector<8x8xf32> to vector<1x8x8xf32>
      tpu.vector_store %arg10[%82, %c0_34, %c0_35], %85 {strides = array<i32>} : memref<2x8x8xf32, #tpu.memory_space<vmem>>, vector<1x8x8xf32>,
    } else {
    }
    %31 = arith.index_cast %arg2 : i32 to index
    %c0_10 = arith.constant 0 : index
    %c0_11 = arith.constant 0 : index
    %32 = vector.load %arg8[%31, %c0_10, %c0_11] : memref<2x8x8xf32, #tpu.memory_space<vmem>>, vector<1x8x8xf32>
    %33 = vector.shape_cast %32 : vector<1x8x8xf32> to vector<8x8xf32>
    %34 = arith.maximumf %33, %20 : vector<8x8xf32>
    %35 = arith.index_cast %arg2 : i32 to index
    %c0_12 = arith.constant 0 : index
    %c0_13 = arith.constant 0 : index
    %36 = vector.load %arg9[%35, %c0_12, %c0_13] : memref<2x8x8xf32, #tpu.memory_space<vmem>>, vector<1x8x8xf32>
    %37 = vector.shape_cast %36 : vector<1x8x8xf32> to vector<8x8xf32>
    %38 = arith.subf %33, %34 : vector<8x8xf32>
    %39 = math.exp %38 : vector<8x8xf32>
    %40 = arith.mulf %37, %39 : vector<8x8xf32>
    %41 = vector.shape_cast %34 : vector<8x8xf32> to vector<8x8x1xf32>
    %42 = vector.broadcast %41 : vector<8x8x1xf32> to vector<8x8x128xf32>
    %43 = arith.subf %19, %42 : vector<8x8x128xf32>
    %44 = math.exp %43 : vector<8x8x128xf32>
    %cst_14 = arith.constant dense<0.000000e+00> : vector<8x8xf32>
    %45 = vector.multi_reduction <add>, %44, %cst_14 [2] : vector<8x8x128xf32> to vector<8x8xf32>
    %46 = arith.addf %40, %45 : vector<8x8xf32>
    %47 = arith.index_cast %arg2 : i32 to index
    %c0_15 = arith.constant 0 : index
    %c0_16 = arith.constant 0 : index
    %48 = vector.load %arg8[%47, %c0_15, %c0_16] : memref<2x8x8xf32, #tpu.memory_space<vmem>>, vector<1x8x8xf32>
    %49 = vector.shape_cast %48 : vector<1x8x8xf32> to vector<8x8xf32>
    %50 = vector.shape_cast %34 : vector<8x8xf32> to vector<1x8x8xf32>
    tpu.vector_store %arg8[%47, %c0_15, %c0_16], %50 {strides = array<i32>} : memref<2x8x8xf32, #tpu.memory_space<vmem>>, vector<1x8x8xf32>,
    %51 = arith.index_cast %arg2 : i32 to index
    %c0_17 = arith.constant 0 : index
    %c0_18 = arith.constant 0 : index
    %52 = vector.load %arg9[%51, %c0_17, %c0_18] : memref<2x8x8xf32, #tpu.memory_space<vmem>>, vector<1x8x8xf32>
    %53 = vector.shape_cast %52 : vector<1x8x8xf32> to vector<8x8xf32>
    %54 = vector.shape_cast %46 : vector<8x8xf32> to vector<1x8x8xf32>
    tpu.vector_store %arg9[%51, %c0_17, %c0_18], %54 {strides = array<i32>} : memref<2x8x8xf32, #tpu.memory_space<vmem>>, vector<1x8x8xf32>,
    %55 = arith.index_cast %arg2 : i32 to index
    %c0_19 = arith.constant 0 : index
    %c0_20 = arith.constant 0 : index
    %56 = vector.load %arg10[%55, %c0_19, %c0_20] : memref<2x8x8xf32, #tpu.memory_space<vmem>>, vector<1x8x8xf32>
    %57 = vector.shape_cast %56 : vector<1x8x8xf32> to vector<8x8xf32>
    %58 = arith.addf %57, %27 : vector<8x8xf32>
    %59 = arith.index_cast %arg2 : i32 to index
    %c0_21 = arith.constant 0 : index
    %c0_22 = arith.constant 0 : index
    %60 = vector.load %arg10[%59, %c0_21, %c0_22] : memref<2x8x8xf32, #tpu.memory_space<vmem>>, vector<1x8x8xf32>
    %61 = vector.shape_cast %60 : vector<1x8x8xf32> to vector<8x8xf32>
    %62 = vector.shape_cast %58 : vector<8x8xf32> to vector<1x8x8xf32>
    tpu.vector_store %arg10[%59, %c0_21, %c0_22], %62 {strides = array<i32>} : memref<2x8x8xf32, #tpu.memory_space<vmem>>, vector<1x8x8xf32>,
    %c2_i32 = arith.constant 2 : i32
    %63 = arith.cmpi eq, %arg1, %c2_i32 : i32
    %c0_i32_23 = arith.constant 0 : i32
    %64 = arith.cmpi eq, %arg2, %c0_i32_23 : i32
    %65 = arith.andi %63, %64 : i1
    %66 = arith.extui %65 : i1 to i32
    %c0_i32_24 = arith.constant 0 : i32
    %67 = arith.cmpi ne, %66, %c0_i32_24 : i32
    scf.if %67 {
      %cst_27 = arith.constant 0.000000e+00 : f32
      %71 = vector.broadcast %cst_27 : f32 to vector<1x8xf32>
      %c0_28 = arith.constant 0 : index
      %c0_29 = arith.constant 0 : index
      %72 = vector.load %arg7[%c0_28, %c0_29] : memref<1x8xf32, #tpu.memory_space<vmem>>, vector<1x8xf32>
      tpu.vector_store %arg7[%c0_28, %c0_29], %71 {strides = array<i32>} : memref<1x8xf32, #tpu.memory_space<vmem>>, vector<1x8xf32>,
    } else {
    }
    %c2_i32_25 = arith.constant 2 : i32
    %68 = arith.cmpi eq, %arg1, %c2_i32_25 : i32
    %69 = arith.extui %68 : i1 to i32
    %c0_i32_26 = arith.constant 0 : i32
    %70 = arith.cmpi ne, %69, %c0_i32_26 : i32
    scf.if %70 {
      %71 = arith.index_cast %arg2 : i32 to index
      %c0_27 = arith.constant 0 : index
      %c0_28 = arith.constant 0 : index
      %72 = vector.load %arg8[%71, %c0_27, %c0_28] : memref<2x8x8xf32, #tpu.memory_space<vmem>>, vector<1x8x8xf32>
      %73 = vector.shape_cast %72 : vector<1x8x8xf32> to vector<8x8xf32>
      %74 = arith.index_cast %arg2 : i32 to index
      %c0_29 = arith.constant 0 : index
      %c0_30 = arith.constant 0 : index
      %75 = vector.load %arg9[%74, %c0_29, %c0_30] : memref<2x8x8xf32, #tpu.memory_space<vmem>>, vector<1x8x8xf32>
      %76 = vector.shape_cast %75 : vector<1x8x8xf32> to vector<8x8xf32>
      %77 = math.log %76 : vector<8x8xf32>
      %78 = arith.addf %73, %77 : vector<8x8xf32>
      %79 = arith.index_cast %arg2 : i32 to index
      %c0_31 = arith.constant 0 : index
      %c0_32 = arith.constant 0 : index
      %80 = vector.load %arg10[%79, %c0_31, %c0_32] : memref<2x8x8xf32, #tpu.memory_space<vmem>>, vector<1x8x8xf32>
      %81 = vector.shape_cast %80 : vector<1x8x8xf32> to vector<8x8xf32>
      %82 = arith.subf %78, %81 : vector<8x8xf32>
      %83 = tpu.iota {dimensions = array<i32: 0>} : vector<8x8xi32>
      %c8_i32 = arith.constant 8 : i32
      %84 = arith.muli %arg2, %c8_i32 : i32
      %85 = vector.broadcast %84 : i32 to vector<8x8xi32>
      %86 = arith.addi %83, %85 : vector<8x8xi32>
      %c12_i32 = arith.constant 12 : i32
      %87 = vector.broadcast %c12_i32 : i32 to vector<8x8xi32>
      %88 = arith.cmpi slt, %86, %87 : vector<8x8xi32>
      %cst_33 = arith.constant 0.000000e+00 : f32
      %89 = vector.broadcast %cst_33 : f32 to vector<8x8xf32>
      %90 = arith.select %88, %82, %89 : vector<8x8xi1>, vector<8x8xf32>
      %c0_34 = arith.constant 0 : index
      %c0_35 = arith.constant 0 : index
      %91 = vector.load %arg7[%c0_34, %c0_35] : memref<1x8xf32, #tpu.memory_space<vmem>>, vector<1x8xf32>
      %cst_36 = arith.constant dense<0.000000e+00> : vector<8xf32>
      %92 = vector.multi_reduction <add>, %90, %cst_36 [0] : vector<8x8xf32> to vector<8xf32>
      %93 = vector.shape_cast %92 : vector<8xf32> to vector<1x8xf32>
      %94 = arith.addf %91, %93 : vector<1x8xf32>
      %c1_i32 = arith.constant 1 : i32
      %95 = arith.cmpi eq, %arg2, %c1_i32 : i32
      %cst_37 = arith.constant 0.0833333358 : f32
      %96 = vector.broadcast %cst_37 : f32 to vector<1x8xf32>
      %97 = arith.mulf %94, %96 : vector<1x8xf32>
      %98 = arith.select %95, %97, %94 : vector<1x8xf32>
      %c0_38 = arith.constant 0 : index
      %c0_39 = arith.constant 0 : index
      %99 = vector.load %arg7[%c0_38, %c0_39] : memref<1x8xf32, #tpu.memory_space<vmem>>, vector<1x8xf32>
      tpu.vector_store %arg7[%c0_38, %c0_39], %98 {strides = array<i32>} : memref<1x8xf32, #tpu.memory_space<vmem>>, vector<1x8xf32>,
    } else {
    }
    return
  }
  func.func @transform_0(%arg0: i32, %arg1: i32, %arg2: i32) -> (i32, i32) {
    %c0_i32 = arith.constant 0 : i32
    %c0_i32_0 = arith.constant 0 : i32
    return %arg0, %c0_i32 : i32, i32
  }
  func.func @transform_1(%arg0: i32, %arg1: i32, %arg2: i32) -> (i32, i32) {
    %c0_i32 = arith.constant 0 : i32
    return %arg0, %arg1 : i32, i32
  }
  func.func @transform_2(%arg0: i32, %arg1: i32, %arg2: i32) -> (i32, i32) {
    %c0_i32 = arith.constant 0 : i32
    return %arg0, %arg1 : i32, i32
  }
  func.func @transform_3(%arg0: i32, %arg1: i32, %arg2: i32) -> (i32, i32) {
    %c0_i32 = arith.constant 0 : i32
    return %arg2, %arg1 : i32, i32
  }
  func.func @transform_4(%arg0: i32, %arg1: i32, %arg2: i32) -> (i32, i32) {
    %c0_i32 = arith.constant 0 : i32
    %c0_i32_0 = arith.constant 0 : i32
    return %c0_i32, %arg0 : i32, i32
  }
}

</mosaic_0001>

<llo_original>
// kernel: tpu_custom_call.1
$region0: #{tpu_custom_call.1}
  #allocation0 [shape = 'u32[]', space=smem, size = 0x4, offset = 0x4, fixed_abs, tag = 'smem constant byte address 0x4 - core index']
  #allocation1 [shape = 'u32[144,128]{1,0:T(1,128)}', space=vmem, size = 0x12000, scoped, tag = 'internal scratch']
  #allocation2 [shape = 'f32[2,8,8]{2,1,0:T(8,128)}', space=vmem, size = 0x2000, scoped, tag = 'scratch operand']
  #allocation3 [shape = 'f32[2,8,8]{2,1,0:T(8,128)}', space=vmem, size = 0x2000, scoped, tag = 'scratch operand']
  #allocation4 [shape = 'f32[2,8,8]{2,1,0:T(8,128)}', space=vmem, size = 0x2000, scoped, tag = 'scratch operand']
  %s0 = inlined_call_operand.vmem [shape: s32[8,1], index: 0, kind: input, shape index: {}]
  %s1 = inlined_call_operand.hbm [shape: f32[8,384], index: 1, kind: input, shape index: {}]
  %s2 = inlined_call_operand.hbm [shape: f32[8,384], index: 2, kind: input, shape index: {}]
  %s3 = inlined_call_operand.hbm [shape: f32[16,384], index: 3, kind: input, shape index: {}]
  %s4 = inlined_call_operand.hbm [shape: f32[1,8], index: 4, kind: output, shape index: {}]
  %s5 = sld [smem:[#allocation0]]
  $region73: #{tpu_custom_call.1} parent=0
    _
  %s7 = ssub.s32 1, %s5
  %s8 = scalar_select 0, %s7, %s5
  $region1: #{tpu_custom_call.1} parent=0
    #allocation5 [shape = 'u8[8192]{0}', space=vmem, size = 0x2000, scoped, tag = 'input window, operand 1']
    #allocation6 [shape = 's32[2]{0}', space=sflag, size = 0x8, scoped, tag = 'scoped memory for tpu_custom_call.1']
    #allocation7 [shape = 's32[2]{0}', space=sflag, size = 0x8, scoped, tag = 'scoped memory for tpu_custom_call.1']
    #allocation8 [shape = 'u8[8192]{0}', space=vmem, size = 0x2000, scoped, tag = 'input window, operand 2']
    #allocation9 [shape = 's32[2]{0}', space=sflag, size = 0x8, scoped, tag = 'scoped memory for tpu_custom_call.1']
    #allocation10 [shape = 'u8[8192]{0}', space=vmem, size = 0x2000, scoped, tag = 'input window, operand 3']
    #allocation11 [shape = 'u8[512]{0}', space=vmem, size = 0x400, scoped, tag = 'output window, operand 0, single buffered']
    %9 = vsyncpa [#allocation6], 0
    %s10 = scalar_lea.sflag [#allocation6], 1
    %11 = vsyncpa %s10, 0
    %12 = vsyncpa [#allocation9], 0
    %s13 = scalar_lea.sflag [#allocation9], 1
    %14 = vsyncpa %s13, 0
    %15 = vsyncpa [#allocation7], 0
    loop: start=0, step=1, limit=8
    $region2: #{tpu_custom_call.1} parent=1 // loop_pre_header
      _
    $region3: #{tpu_custom_call.1} parent=1 // loop_header
      %s17 = sphi 0, %s21
      %p18 = scmp.ge.s32.totalorder %s17, 8
      %s24 = sphi 0, %s43
      %s25 = sphi 0, %s39
      %s26 = sphi 0, %s35
      %s27 = sphi 0, %s24
      %s28 = sphi 0, %s25
      %s29 = sphi 0, %s26
      %s30 = sphi 0, %s27
      %s31 = sphi 0, %s28
      %s32 = sphi 0, %s29
      %s46 = sphi 0, %s48
      %s49 = sphi 0, %s46
      %s50 = sphi 0, %s49
      %s66 = sphi 0, %s50
      %s74 = sphi 0, %s76
      %s77 = sphi 0, %s74
      %s78 = sphi 0, %s77
      %s94 = sphi 0, %s78
      %s102 = sphi 0, %s104
      %s105 = sphi 0, %s102
      %s106 = sphi 0, %s105
      %s122 = sphi 0, %s106
      %s130 = sphi 0, %s132
      %s133 = sphi 0, %s130
      %s134 = sphi 0, %s133
      %s150 = sphi 0, %s134
      %s156 = sphi 0, %s158
      %s159 = sphi 0, %s156
      %s160 = sphi 0, %s159
      %s176 = sphi 0, %s160
    $region4: #{tpu_custom_call.1} parent=1 // loop_header_branch
      %20 = sbr.rel (%p18) target = $region8
    $region5: #{tpu_custom_call.1} parent=1 // loop_body
      %s22 = ssub.s32 %s17, 1
      %s23 = ssub.s32 %s17, 2
      %s33 = sadd.s32 1, %s26
      %p34 = scmp.ge.s32.totalorder %s33, 2
      %s35 = scalar_select %p34, 0, %s33
      %s36 = sadd.s32 1, %s25
      %s37 = scalar_select %p34, %s36, %s25
      %p38 = scmp.ge.s32.totalorder %s37, 3
      %s39 = scalar_select %p38, 0, %s37
      %s40 = sadd.s32 1, %s24
      %s41 = scalar_select %p38, %s40, %s24
      %p42 = scmp.ge.s32.totalorder %s41, 1
      %s43 = scalar_select %p42, 0, %s41
      %s44 = ssub.s32 %s24, %s43
      %p45 = scmp.eq.s32.totalorder %s44, 0
      %s47 = sadd.s32 %s46, 1
      %s48 = scalar_select %p45, %s46, %s47
      %p51 = pneg %p45
      %p52 = scmp.eq.s32.totalorder %s17, 5
      %p53 = por %p51, %p52
      %p54 = scmp.ne.s32.totalorder %s46, %s49
      %p55 = scmp.eq.s32.totalorder %s17, 0
      %p56 = por %p54, %p55
      %p57 = scmp.ne.s32.totalorder %s46, %s49
      %p58 = scmp.eq.s32.totalorder %s22, 5
      %p59 = por %p57, %p58
      %p60 = scmp.ne.s32.totalorder %s49, %s50
      %p61 = scmp.eq.s32.totalorder %s22, 0
      %p62 = por %p60, %p61
      %p63 = scmp.ne.s32.totalorder %s49, %s50
      %p64 = scmp.eq.s32.totalorder %s23, 5
      %p65 = por %p63, %p64
      %p67 = scmp.ne.s32.totalorder %s50, %s66
      %p68 = scmp.eq.s32.totalorder %s23, 0
      %p69 = por %p67, %p68
      %s70 = ssub.s32 %s24, %s43
      %s71 = ssub.s32 %s25, %s39
      %s72 = sor.u32 %s70, %s71
      %p73 = scmp.eq.s32.totalorder %s72, 0
      %s75 = sadd.s32 %s74, 1
      %s76 = scalar_select %p73, %s74, %s75
      %p79 = pneg %p73
      %p80 = scmp.eq.s32.totalorder %s17, 5
      %p81 = por %p79, %p80
      %p82 = scmp.ne.s32.totalorder %s74, %s77
      %p83 = scmp.eq.s32.totalorder %s17, 0
      %p84 = por %p82, %p83
      %p85 = scmp.ne.s32.totalorder %s74, %s77
      %p86 = scmp.eq.s32.totalorder %s22, 5
      %p87 = por %p85, %p86
      %p88 = scmp.ne.s32.totalorder %s77, %s78
      %p89 = scmp.eq.s32.totalorder %s22, 0
      %p90 = por %p88, %p89
      %p91 = scmp.ne.s32.totalorder %s77, %s78
      %p92 = scmp.eq.s32.totalorder %s23, 5
      %p93 = por %p91, %p92
      %p95 = scmp.ne.s32.totalorder %s78, %s94
      %p96 = scmp.eq.s32.totalorder %s23, 0
      %p97 = por %p95, %p96
      %s98 = ssub.s32 %s24, %s43
      %s99 = ssub.s32 %s25, %s39
      %s100 = sor.u32 %s98, %s99
      %p101 = scmp.eq.s32.totalorder %s100, 0
      %s103 = sadd.s32 %s102, 1
      %s104 = scalar_select %p101, %s102, %s103
      %p107 = pneg %p101
      %p108 = scmp.eq.s32.totalorder %s17, 5
      %p109 = por %p107, %p108
      %p110 = scmp.ne.s32.totalorder %s102, %s105
      %p111 = scmp.eq.s32.totalorder %s17, 0
      %p112 = por %p110, %p111
      %p113 = scmp.ne.s32.totalorder %s102, %s105
      %p114 = scmp.eq.s32.totalorder %s22, 5
      %p115 = por %p113, %p114
      %p116 = scmp.ne.s32.totalorder %s105, %s106
      %p117 = scmp.eq.s32.totalorder %s22, 0
      %p118 = por %p116, %p117
      %p119 = scmp.ne.s32.totalorder %s105, %s106
      %p120 = scmp.eq.s32.totalorder %s23, 5
      %p121 = por %p119, %p120
      %p123 = scmp.ne.s32.totalorder %s106, %s122
      %p124 = scmp.eq.s32.totalorder %s23, 0
      %p125 = por %p123, %p124
      %s126 = ssub.s32 %s26, %s35
      %s127 = ssub.s32 %s25, %s39
      %s128 = sor.u32 %s126, %s127
      %p129 = scmp.eq.s32.totalorder %s128, 0
      %s131 = sadd.s32 %s130, 1
      %s132 = scalar_select %p129, %s130, %s131
      %p135 = pneg %p129
      %p136 = scmp.eq.s32.totalorder %s17, 5
      %p137 = por %p135, %p136
      %p138 = scmp.ne.s32.totalorder %s130, %s133
      %p139 = scmp.eq.s32.totalorder %s17, 0
      %p140 = por %p138, %p139
      %p141 = scmp.ne.s32.totalorder %s130, %s133
      %p142 = scmp.eq.s32.totalorder %s22, 5
      %p143 = por %p141, %p142
      %p144 = scmp.ne.s32.totalorder %s133, %s134
      %p145 = scmp.eq.s32.totalorder %s22, 0
      %p146 = por %p144, %p145
      %p147 = scmp.ne.s32.totalorder %s133, %s134
      %p148 = scmp.eq.s32.totalorder %s23, 5
      %p149 = por %p147, %p148
      %p151 = scmp.ne.s32.totalorder %s134, %s150
      %p152 = scmp.eq.s32.totalorder %s23, 0
      %p153 = por %p151, %p152
      %s154 = ssub.s32 %s24, %s43
      %p155 = scmp.eq.s32.totalorder %s154, 0
      %s157 = sadd.s32 %s156, 1
      %s158 = scalar_select %p155, %s156, %s157
      %p161 = pneg %p155
      %p162 = scmp.eq.s32.totalorder %s17, 5
      %p163 = por %p161, %p162
      %p164 = scmp.ne.s32.totalorder %s156, %s159
      %p165 = scmp.eq.s32.totalorder %s17, 0
      %p166 = por %p164, %p165
      %p167 = scmp.ne.s32.totalorder %s156, %s159
      %p168 = scmp.eq.s32.totalorder %s22, 5
      %p169 = por %p167, %p168
      %p170 = scmp.ne.s32.totalorder %s159, %s160
      %p171 = scmp.eq.s32.totalorder %s22, 0
      %p172 = por %p170, %p171
      %p173 = scmp.ne.s32.totalorder %s159, %s160
      %p174 = scmp.eq.s32.totalorder %s23, 5
      %p175 = por %p173, %p174
      %p177 = scmp.ne.s32.totalorder %s160, %s176
      %p178 = scmp.eq.s32.totalorder %s23, 0
      %p179 = por %p177, %p178
      %p180 = scmp.le.s32.totalorder 1, %s17
      %p181 = scmp.lt.s32.totalorder %s17, 7
      %p182 = pnand %p180, %p181
      %p183 = pneg %p182
      // Predicated region
      $region9: #{tpu_custom_call.1} parent=5 // pred_check
        _
      $region10: #{tpu_custom_call.1} parent=5 // pred_check_branch
        %185 = sbr.rel (%p182) target = $region12
      $region11: #{tpu_custom_call.1} parent=5 // pred_region
        %s186 = ssub.s32 %s17, 1
        // Predicated region
        $region13: #{tpu_custom_call.1} parent=11 // pred_check
          %p187 = pneg %p62
        $region14: #{tpu_custom_call.1} parent=11 // pred_check_branch
          %189 = sbr.rel (%p187) target = $region16
        $region15: #{tpu_custom_call.1} parent=11 // pred_region
          %p190 = scmp.lt.s32.totalorder %s27, 0
          %s191 = scalar_select %p190, %s27, 0
          %s192 = smul.addr %s191, 8
          %s193 = scalar_lea.vmem %s0, %s192
        $region16: #{tpu_custom_call.1} parent=11 // pred_fallthru
          _
      $region12: #{tpu_custom_call.1} parent=5 // pred_fallthru
        _
      %p194 = scmp.lt.s32.totalorder %s17, 6
      // Predicated region
      $region17: #{tpu_custom_call.1} parent=5 // pred_check
        %p195 = pneg %p194
      $region18: #{tpu_custom_call.1} parent=5 // pred_check_branch
        %197 = sbr.rel (%p195) target = $region20
      $region19: #{tpu_custom_call.1} parent=5 // pred_region
        // Predicated region
        $region21: #{tpu_custom_call.1} parent=19 // pred_check
          %p198 = pneg %p84
        $region22: #{tpu_custom_call.1} parent=19 // pred_check_branch
          %200 = sbr.rel (%p198) target = $region24
        $region23: #{tpu_custom_call.1} parent=19 // pred_region
          %s201 = sand.u32 %s74, 1
          %s202 = scalar_lea.sflag [#allocation6], %s201
          %s203 = sand.u32 %s74, 1
          %s204 = smul.addr %s203, 8
          %s205 = scalar_lea.vmem [#allocation5], %s204
          %s207 = ssub.s32 128, 128
          %208 = vsyncadd %s202, %s207
          %s209 = smul.addr %s24, 3
          %s210 = sadd.s32 %s25, %s209
          %s211 = smul.addr %s210, 128
          %s212 = scalar_lea.hbm %s1, %s211
          %s214 = sshll.u32 %s205, 4
          %s215 = int_to_ptr.vmem [resolvable:$true] %s214
          %217 = dma.hbm_to_vmem [thread:$0]  %s212, 128, %s215, %s202
        $region24: #{tpu_custom_call.1} parent=19 // pred_fallthru
          _
        // Predicated region
        $region25: #{tpu_custom_call.1} parent=19 // pred_check
          %p218 = pneg %p112
        $region26: #{tpu_custom_call.1} parent=19 // pred_check_branch
          %220 = sbr.rel (%p218) target = $region28
        $region27: #{tpu_custom_call.1} parent=19 // pred_region
          %s221 = sand.u32 %s17, 1
          %s222 = scalar_lea.sflag [#allocation9], %s221
          %s223 = sand.u32 %s102, 1
          %s224 = smul.addr %s223, 8
          %s225 = scalar_lea.vmem [#allocation8], %s224
          %s227 = ssub.s32 128, 128
          %228 = vsyncadd %s222, %s227
          %s229 = smul.addr %s24, 3
          %s230 = sadd.s32 %s25, %s229
          %s231 = smul.addr %s230, 128
          %s232 = scalar_lea.hbm %s2, %s231
          %s234 = sshll.u32 %s225, 4
          %s235 = int_to_ptr.vmem [resolvable:$true] %s234
          %237 = dma.hbm_to_vmem [thread:$0]  %s232, 128, %s235, %s222
        $region28: #{tpu_custom_call.1} parent=19 // pred_fallthru
          _
        // Predicated region
        $region29: #{tpu_custom_call.1} parent=19 // pred_check
          %p238 = pneg %p140
        $region30: #{tpu_custom_call.1} parent=19 // pred_check_branch
          %240 = sbr.rel (%p238) target = $region32
        $region31: #{tpu_custom_call.1} parent=19 // pred_region
          %s241 = sand.u32 %s17, 1
          %s242 = scalar_lea.sflag [#allocation9], %s241
          %s243 = sand.u32 %s130, 1
          %s244 = smul.addr %s243, 8
          %s245 = scalar_lea.vmem [#allocation10], %s244
          %s247 = ssub.s32 128, 128
          %248 = vsyncadd %s242, %s247
          %s249 = smul.addr %s26, 3
          %s250 = sadd.s32 %s25, %s249
          %s251 = smul.addr %s250, 128
          %s252 = scalar_lea.hbm %s3, %s251
          %s254 = sshll.u32 %s245, 4
          %s255 = int_to_ptr.vmem [resolvable:$true] %s254
          %257 = dma.hbm_to_vmem [thread:$0]  %s252, 128, %s255, %s242
        $region32: #{tpu_custom_call.1} parent=19 // pred_fallthru
          _
      $region20: #{tpu_custom_call.1} parent=5 // pred_fallthru
        _
      %p258 = scmp.le.s32.totalorder 1, %s17
      %p259 = scmp.lt.s32.totalorder %s17, 7
      %p260 = pnand %p258, %p259
      %p261 = pneg %p260
      // Predicated region
      $region33: #{tpu_custom_call.1} parent=5 // pred_check
        _
      $region34: #{tpu_custom_call.1} parent=5 // pred_check_branch
        %263 = sbr.rel (%p260) target = $region36
      $region35: #{tpu_custom_call.1} parent=5 // pred_region
        %s264 = ssub.s32 %s17, 1
        %s265 = sand.u32 %s77, 1
        %s266 = scalar_lea.sflag [#allocation6], %s265
        %s267 = sand.u32 %s77, 1
        %s268 = smul.addr %s267, 8
        %s269 = scalar_lea.vmem [#allocation5], %s268
        // Predicated region
        $region37: #{tpu_custom_call.1} parent=35 // pred_check
          %p270 = pneg %p90
        $region38: #{tpu_custom_call.1} parent=35 // pred_check_branch
          %272 = sbr.rel (%p270) target = $region40
        $region39: #{tpu_custom_call.1} parent=35 // pred_region
          %273 = dma.done %s266, 128
        $region40: #{tpu_custom_call.1} parent=35 // pred_fallthru
          _
        %s274 = sand.u32 %s22, 1
        %s275 = scalar_lea.sflag [#allocation9], %s274
        %s276 = sand.u32 %s105, 1
        %s277 = smul.addr %s276, 8
        %s278 = scalar_lea.vmem [#allocation8], %s277
        // Predicated region
        $region41: #{tpu_custom_call.1} parent=35 // pred_check
          %p279 = pneg %p118
        $region42: #{tpu_custom_call.1} parent=35 // pred_check_branch
          %281 = sbr.rel (%p279) target = $region44
        $region43: #{tpu_custom_call.1} parent=35 // pred_region
          %282 = dma.done %s275, 128
        $region44: #{tpu_custom_call.1} parent=35 // pred_fallthru
          _
        %s283 = sand.u32 %s22, 1
        %s284 = scalar_lea.sflag [#allocation9], %s283
        %s285 = sand.u32 %s133, 1
        %s286 = smul.addr %s285, 8
        %s287 = scalar_lea.vmem [#allocation10], %s286
        // Predicated region
        $region45: #{tpu_custom_call.1} parent=35 // pred_check
          %p288 = pneg %p146
        $region46: #{tpu_custom_call.1} parent=35 // pred_check_branch
          %290 = sbr.rel (%p288) target = $region48
        $region47: #{tpu_custom_call.1} parent=35 // pred_region
          %291 = dma.done %s284, 128
        $region48: #{tpu_custom_call.1} parent=35 // pred_fallthru
          _
        %p292 = scmp.lt.s32.totalorder %s27, 0
        %s293 = scalar_select %p292, %s27, 0
        %s294 = smul.addr %s293, 8
        %s295 = scalar_lea.vmem %s0, %s294
        %p296 = pneg %p62
        %p297 = pneg %p59
        %s298 = sand.u32 %s77, 1
        %s299 = scalar_lea.sflag [#allocation6], %s298
        %s300 = sand.u32 %s77, 1
        %s301 = smul.addr %s300, 8
        %s302 = scalar_lea.vmem [#allocation5], %s301
        %p303 = pneg %p90
        %p304 = pneg %p87
        %s305 = sand.u32 %s22, 1
        %s306 = scalar_lea.sflag [#allocation9], %s305
        %s307 = sand.u32 %s105, 1
        %s308 = smul.addr %s307, 8
        %s309 = scalar_lea.vmem [#allocation8], %s308
        %p310 = pneg %p118
        %p311 = pneg %p115
        %s312 = sand.u32 %s22, 1
        %s313 = scalar_lea.sflag [#allocation9], %s312
        %s314 = sand.u32 %s133, 1
        %s315 = smul.addr %s314, 8
        %s316 = scalar_lea.vmem [#allocation10], %s315
        %p317 = pneg %p146
        %p318 = pneg %p143
        %p319 = pneg %p172
        %p320 = pneg %p169
        %p321 = scmp.lt.s32.totalorder %s27, 0
        %s322 = scalar_select %p321, %s27, 0
        %s323 = smul.addr %s322, 8
        %s324 = scalar_lea.vmem %s0, %s323
        %v325 = vld [vmem:[%s269] sm:$0xff]
        %v326 = vld [vmem:[%s278] sm:$0xff]
        %v327 = vld [vmem:[%s287] sm:$0xff]
        %v328 = vlaneseq
        %v329 = vand.u32 %v328, 127
        %s330 = smul.u32 %s28, 128
        %v331 = vstv %s330
        %v332 = vadd.s32 %v329, %v331
        %v333 = vld [vmem:[%s324] sm:$0xff]
        %334 = vset.pattern.permute.xlu0 0
        %335 = vperm.xlu0 %334, %v333
        %v336 = vpop.permute.xlu0 %335
        %vm337 = vcmp.eq.s32.totalorder %v332, %v336
        %v338 = vsel %vm337, 1, 0
        %v339 = vcvt.s32.f32 %v338
        %v341 = vcombine.high %v327, %v327
        %v343 = vunpack.c.l.s4 1966171168
        %v344 = vunpack.c.0.s8 %v343
        %v345 = vlaneseq
        %v346 = vshrl.u32 %v345, 7
        %v347 = vsub.s32 %v344, %v346
        %v348 = vrot.slane %v327, %v347
        %v350 = vunpack.c.l.s4 1966171168
        %v351 = vunpack.c.0.s8 %v350
        %v352 = vlaneseq
        %v353 = vshrl.u32 %v352, 7
        %v354 = vsub.s32 %v351, %v353
        %v355 = vrot.slane %v341, %v354
        %v356 = vcombine.high %v348, %v348
        %v357 = vcombine.high %v355, %v355
        %v359 = vunpack.c.l.s4 1966171168
        %v360 = vunpack.c.0.s8 %v359
        %v361 = vlaneseq
        %v362 = vshrl.u32 %v361, 7
        %v363 = vsub.s32 %v360, %v362
        %v364 = vrot.slane %v348, %v363
        %v366 = vunpack.c.l.s4 1966171168
        %v367 = vunpack.c.0.s8 %v366
        %v368 = vlaneseq
        %v369 = vshrl.u32 %v368, 7
        %v370 = vsub.s32 %v367, %v369
        %v371 = vrot.slane %v355, %v370
        %v373 = vunpack.c.l.s4 1966171168
        %v374 = vunpack.c.0.s8 %v373
        %v375 = vlaneseq
        %v376 = vshrl.u32 %v375, 7
        %v377 = vsub.s32 %v374, %v376
        %v378 = vrot.slane %v356, %v377
        %v380 = vunpack.c.l.s4 1966171168
        %v381 = vunpack.c.0.s8 %v380
        %v382 = vlaneseq
        %v383 = vshrl.u32 %v382, 7
        %v384 = vsub.s32 %v381, %v383
        %v385 = vrot.slane %v357, %v384
        %v386 = vcombine.high %v364, %v364
        %v387 = vcombine.high %v371, %v371
        %v388 = vcombine.high %v378, %v378
        %v389 = vcombine.high %v385, %v385
        %v390 = vlaneseq
        %v391 = vshrl.u32 %v390, 7
        %v392 = vsub.s32 0, %v391
        %v393 = vrot.slane %v364, %v392
        %v394 = vlaneseq
        %v395 = vshrl.u32 %v394, 7
        %v396 = vsub.s32 0, %v395
        %v397 = vrot.slane %v378, %v396
        %v398 = vlaneseq
        %v399 = vshrl.u32 %v398, 7
        %v400 = vsub.s32 0, %v399
        %v401 = vrot.slane %v386, %v400
        %v402 = vlaneseq
        %v403 = vshrl.u32 %v402, 7
        %v404 = vsub.s32 0, %v403
        %v405 = vrot.slane %v388, %v404
        %v406 = vlaneseq
        %v407 = vshrl.u32 %v406, 7
        %v408 = vsub.s32 0, %v407
        %v409 = vrot.slane %v371, %v408
        %v410 = vlaneseq
        %v411 = vshrl.u32 %v410, 7
        %v412 = vsub.s32 0, %v411
        %v413 = vrot.slane %v385, %v412
        %v414 = vlaneseq
        %v415 = vshrl.u32 %v414, 7
        %v416 = vsub.s32 0, %v415
        %v417 = vrot.slane %v387, %v416
        %v418 = vlaneseq
        %v419 = vshrl.u32 %v418, 7
        %v420 = vsub.s32 0, %v419
        %v421 = vrot.slane %v389, %v420
        %v430 = vmul.f32 %v326, %v393
        %v431 = vmul.f32 %v326, %v397
        %v432 = vmul.f32 %v326, %v401
        %v433 = vmul.f32 %v326, %v405
        %v434 = vmul.f32 %v326, %v409
        %v435 = vmul.f32 %v326, %v413
        %v436 = vmul.f32 %v326, %v417
        %v437 = vmul.f32 %v326, %v421
        %v438 = vadd.f32 %v325, %v430
        %v439 = vadd.f32 %v325, %v431
        %v440 = vadd.f32 %v325, %v432
        %v441 = vadd.f32 %v325, %v433
        %v442 = vadd.f32 %v325, %v434
        %v443 = vadd.f32 %v325, %v435
        %v444 = vadd.f32 %v325, %v436
        %v445 = vadd.f32 %v325, %v437
        %446 = vmax.xlane.f32.xlu0 %v438
        %v447 = vpop.xlane.xlu0 %446
        %448 = vmax.xlane.f32.xlu0 %v439
        %v449 = vpop.xlane.xlu0 %448
        %450 = vmax.xlane.f32.xlu0 %v440
        %v451 = vpop.xlane.xlu0 %450
        %452 = vmax.xlane.f32.xlu0 %v441
        %v453 = vpop.xlane.xlu0 %452
        %454 = vmax.xlane.f32.xlu0 %v442
        %v455 = vpop.xlane.xlu0 %454
        %456 = vmax.xlane.f32.xlu0 %v443
        %v457 = vpop.xlane.xlu0 %456
        %458 = vmax.xlane.f32.xlu0 %v444
        %v459 = vpop.xlane.xlu0 %458
        %460 = vmax.xlane.f32.xlu0 %v445
        %v461 = vpop.xlane.xlu0 %460
        %v462 = vmul.f32 %v339, %v325
        %463 = vadd.xlane.f32.xlu0 %v462
        %v464 = vpop.xlane.xlu0 %463
        %v465 = vmul.f32 %v339, %v326
        %466 = vmatprep.subr.mxu0 0.0
        %467 = vmatpush1.xpose.msra.mxu0 %v465
        %468 = vmatprep.subr.mxu0 0.0
        %469 = vmatpush1.xpose.msra.mxu0 0.0
        %470 = vmatprep.subr.mxu0 0.0
        %471 = vmatpush1.xpose.msra.mxu0 0.0
        %472 = vmatprep.subr.mxu0 0.0
        %473 = vmatpush1.xpose.msra.mxu0 0.0
        %474 = vmatprep.subr.mxu0 0.0
        %475 = vmatpush1.xpose.msra.mxu0 0.0
        %476 = vmatprep.subr.mxu0 0.0
        %477 = vmatpush1.xpose.msra.mxu0 0.0
        %478 = vmatprep.subr.mxu0 0.0
        %479 = vmatpush1.xpose.msra.mxu0 0.0
        %480 = vmatprep.subr.mxu0 0.0
        %481 = vmatpush1.xpose.msra.mxu0 0.0
        %482 = vmatprep.subr.mxu0 0.0
        %483 = vmatpush1.xpose.msra.mxu0 0.0
        %484 = vmatprep.subr.mxu0 0.0
        %485 = vmatpush1.xpose.msra.mxu0 0.0
        %486 = vmatprep.subr.mxu0 0.0
        %487 = vmatpush1.xpose.msra.mxu0 0.0
        %488 = vmatprep.subr.mxu0 0.0
        %489 = vmatpush1.xpose.msra.mxu0 0.0
        %490 = vmatprep.subr.mxu0 0.0
        %491 = vmatpush1.xpose.msra.mxu0 0.0
        %492 = vmatprep.subr.mxu0 0.0
        %493 = vmatpush1.xpose.msra.mxu0 0.0
        %494 = vmatprep.subr.mxu0 0.0
        %495 = vmatpush1.xpose.msra.mxu0 0.0
        %496 = vmatprep.subr.mxu0 0.0
        %497 = vmatpush1.xpose.msra.mxu0 0.0
        %498 = vmatprep.subr.mxu0 0.0
        %499 = vmatpush1.xpose.msra.mxu0 0.0
        %500 = vmatprep.subr.mxu0 0.0
        %501 = vmatpush1.xpose.msra.mxu0 0.0
        %502 = vmatprep.subr.mxu0 0.0
        %503 = vmatpush1.xpose.msra.mxu0 0.0
        %504 = vmatprep.subr.mxu0 0.0
        %505 = vmatpush1.xpose.msra.mxu0 0.0
        %506 = vmatprep.subr.mxu0 0.0
        %507 = vmatpush1.xpose.msra.mxu0 0.0
        %508 = vmatprep.subr.mxu0 0.0
        %509 = vmatpush1.xpose.msra.mxu0 0.0
        %510 = vmatprep.subr.mxu0 0.0
        %511 = vmatpush1.xpose.msra.mxu0 0.0
        %512 = vmatprep.subr.mxu0 0.0
        %513 = vmatpush1.xpose.msra.mxu0 0.0
        %514 = vmatprep.subr.mxu0 0.0
        %515 = vmatpush1.xpose.msra.mxu0 0.0
        %516 = vmatprep.subr.mxu0 0.0
        %517 = vmatpush1.xpose.msra.mxu0 0.0
        %518 = vmatprep.subr.mxu0 0.0
        %519 = vmatpush1.xpose.msra.mxu0 0.0
        %520 = vmatprep.subr.mxu0 0.0
        %521 = vmatpush1.xpose.msra.mxu0 0.0
        %522 = vmatprep.subr.mxu0 0.0
        %523 = vmatpush1.xpose.msra.mxu0 0.0
        %524 = vmatprep.subr.mxu0 0.0
        %525 = vmatpush1.xpose.msra.mxu0 0.0
        %526 = vmatprep.subr.mxu0 0.0
        %527 = vmatpush1.xpose.msra.mxu0 0.0
        %528 = vmatprep.subr.mxu0 0.0
        %529 = vmatpush1.xpose.msra.mxu0 0.0
        %530 = vmatprep.mubr.f32.mxu0 0.0
        %531 = vmatmul.mubr.f32.gmra.mrb[0].mxu0 %v327
        %v532 = vpop.f32.mrb[0].mxu0
        %v533 = vadd.f32 0.0, %v532
        %v534 = vpop.f32.mrb[0].mxu0
        %535 = vdwg.mxu0
        %v537 = vlaneseq
        %v538 = vshrl.u32 %v537, 7
        %v539 = vsub.s32 0, %v538
        %v540 = vrot.slane %v533, %v539
        %542 = vbcast.lane.b32.xlu0 %v540, 256
        %v543 = vpop.permute.xlu0 %542
        %v544 = vlaneseq
        %v545 = vshrl.u32 %v544, 7
        %v546 = vsub.s32 1, %v545
        %v547 = vrot.slane %v533, %v546
        %549 = vbcast.lane.b32.xlu0 %v547, 256
        %v550 = vpop.permute.xlu0 %549
        %v551 = vlaneseq
        %v552 = vshrl.u32 %v551, 7
        %v553 = vsub.s32 2, %v552
        %v554 = vrot.slane %v533, %v553
        %556 = vbcast.lane.b32.xlu0 %v554, 256
        %v557 = vpop.permute.xlu0 %556
        %v558 = vlaneseq
        %v559 = vshrl.u32 %v558, 7
        %v560 = vsub.s32 3, %v559
        %v561 = vrot.slane %v533, %v560
        %563 = vbcast.lane.b32.xlu0 %v561, 256
        %v564 = vpop.permute.xlu0 %563
        %v565 = vlaneseq
        %v566 = vshrl.u32 %v565, 7
        %v567 = vsub.s32 4, %v566
        %v568 = vrot.slane %v533, %v567
        %570 = vbcast.lane.b32.xlu0 %v568, 256
        %v571 = vpop.permute.xlu0 %570
        %v572 = vlaneseq
        %v573 = vshrl.u32 %v572, 7
        %v574 = vsub.s32 5, %v573
        %v575 = vrot.slane %v533, %v574
        %577 = vbcast.lane.b32.xlu0 %v575, 256
        %v578 = vpop.permute.xlu0 %577
        %v579 = vlaneseq
        %v580 = vshrl.u32 %v579, 7
        %v581 = vsub.s32 6, %v580
        %v582 = vrot.slane %v533, %v581
        %584 = vbcast.lane.b32.xlu0 %v582, 256
        %v585 = vpop.permute.xlu0 %584
        %v586 = vlaneseq
        %v587 = vshrl.u32 %v586, 7
        %v588 = vsub.s32 7, %v587
        %v589 = vrot.slane %v533, %v588
        %591 = vbcast.lane.b32.xlu0 %v589, 256
        %v592 = vpop.permute.xlu0 %591
        %v601 = vadd.f32 %v464, %v543
        %v602 = vadd.f32 %v464, %v550
        %v603 = vadd.f32 %v464, %v557
        %v604 = vadd.f32 %v464, %v564
        %v605 = vadd.f32 %v464, %v571
        %v606 = vadd.f32 %v464, %v578
        %v607 = vadd.f32 %v464, %v585
        %v608 = vadd.f32 %v464, %v592
        %p609 = scmp.eq.s32.totalorder %s28, 0
        // Predicated region
        $region49: #{tpu_custom_call.1} parent=35 // pred_check
          %p610 = pneg %p609
        $region50: #{tpu_custom_call.1} parent=35 // pred_check_branch
          %612 = sbr.rel (%p610) target = $region52
        $region51: #{tpu_custom_call.1} parent=35 // pred_region
          %s613 = smul.u32 %s29, 8
          %s614 = scalar_lea.vmem [#allocation2], %s613
          %vm615 = vcmask 64512
          %616 = vst.msk [vmem:[%s614] sm:$0xff] %vm615, -3.4028235e+38
          %s617 = scalar_lea.vmem [#allocation3], %s613
          %618 = vst.msk [vmem:[%s617] sm:$0xff] %vm615, 0.0
          %s619 = scalar_lea.vmem [#allocation4], %s613
          %620 = vst.msk [vmem:[%s619] sm:$0xff] %vm615, 0.0
        $region52: #{tpu_custom_call.1} parent=35 // pred_fallthru
          _
        %s621 = smul.u32 %s29, 8
        %s622 = scalar_lea.vmem [#allocation2], %s621
        %v623 = vld [vmem:[%s622] sm:$0xff]
        %v632 = vlaneseq
        %v633 = vshrl.u32 %v632, 7
        %v634 = vsub.s32 %v329, %v633
        %v635 = vrot.slane %v447, %v634
        %v636 = vlaneseq
        %v637 = vshrl.u32 %v636, 7
        %v638 = vsub.s32 %v329, %v637
        %v639 = vrot.slane %v449, %v638
        %v640 = vlaneseq
        %v641 = vshrl.u32 %v640, 7
        %v642 = vsub.s32 %v329, %v641
        %v643 = vrot.slane %v451, %v642
        %v644 = vlaneseq
        %v645 = vshrl.u32 %v644, 7
        %v646 = vsub.s32 %v329, %v645
        %v647 = vrot.slane %v453, %v646
        %v648 = vlaneseq
        %v649 = vshrl.u32 %v648, 7
        %v650 = vsub.s32 %v329, %v649
        %v651 = vrot.slane %v455, %v650
        %v652 = vlaneseq
        %v653 = vshrl.u32 %v652, 7
        %v654 = vsub.s32 %v329, %v653
        %v655 = vrot.slane %v457, %v654
        %v656 = vlaneseq
        %v657 = vshrl.u32 %v656, 7
        %v658 = vsub.s32 %v329, %v657
        %v659 = vrot.slane %v459, %v658
        %v660 = vlaneseq
        %v661 = vshrl.u32 %v660, 7
        %v662 = vsub.s32 %v329, %v661
        %v663 = vrot.slane %v461, %v662
        %vm664 = vcmask 1041409
        %v665 = vsel %vm664, %v639, %v635
        %vm666 = vcmask 1042434
        %v667 = vsel %vm666, %v643, %v665
        %vm668 = vcmask 1043459
        %v669 = vsel %vm668, %v647, %v667
        %vm670 = vcmask 1044484
        %v671 = vsel %vm670, %v651, %v669
        %vm672 = vcmask 1045509
        %v673 = vsel %vm672, %v655, %v671
        %vm674 = vcmask 1046534
        %v675 = vsel %vm674, %v659, %v673
        %vm676 = vcmask 1047559
        %v677 = vsel %vm676, %v663, %v675
        %v679 = vmax.f32 %v623, %v677
        %s680 = scalar_lea.vmem [#allocation3], %s621
        %v681 = vld [vmem:[%s680] sm:$0xff]
        %v682 = vsub.f32 %v623, %v679
        %v683 = vmul.f32 %v682, 1.442695
        %v684 = vpow.pop %v683
        %v685 = vmul.f32 %v681, %v684
        %v686 = vlaneseq
        %v687 = vshrl.u32 %v686, 7
        %v688 = vsub.s32 0, %v687
        %v689 = vrot.slane %v679, %v688
        %691 = vbcast.lane.b32.xlu0 %v689, 256
        %v692 = vpop.permute.xlu0 %691
        %v693 = vlaneseq
        %v694 = vshrl.u32 %v693, 7
        %v695 = vsub.s32 1, %v694
        %v696 = vrot.slane %v679, %v695
        %698 = vbcast.lane.b32.xlu0 %v696, 256
        %v699 = vpop.permute.xlu0 %698
        %v700 = vlaneseq
        %v701 = vshrl.u32 %v700, 7
        %v702 = vsub.s32 2, %v701
        %v703 = vrot.slane %v679, %v702
        %705 = vbcast.lane.b32.xlu0 %v703, 256
        %v706 = vpop.permute.xlu0 %705
        %v707 = vlaneseq
        %v708 = vshrl.u32 %v707, 7
        %v709 = vsub.s32 3, %v708
        %v710 = vrot.slane %v679, %v709
        %712 = vbcast.lane.b32.xlu0 %v710, 256
        %v713 = vpop.permute.xlu0 %712
        %v714 = vlaneseq
        %v715 = vshrl.u32 %v714, 7
        %v716 = vsub.s32 4, %v715
        %v717 = vrot.slane %v679, %v716
        %719 = vbcast.lane.b32.xlu0 %v717, 256
        %v720 = vpop.permute.xlu0 %719
        %v721 = vlaneseq
        %v722 = vshrl.u32 %v721, 7
        %v723 = vsub.s32 5, %v722
        %v724 = vrot.slane %v679, %v723
        %726 = vbcast.lane.b32.xlu0 %v724, 256
        %v727 = vpop.permute.xlu0 %726
        %v728 = vlaneseq
        %v729 = vshrl.u32 %v728, 7
        %v730 = vsub.s32 6, %v729
        %v731 = vrot.slane %v679, %v730
        %733 = vbcast.lane.b32.xlu0 %v731, 256
        %v734 = vpop.permute.xlu0 %733
        %v735 = vlaneseq
        %v736 = vshrl.u32 %v735, 7
        %v737 = vsub.s32 7, %v736
        %v738 = vrot.slane %v679, %v737
        %740 = vbcast.lane.b32.xlu0 %v738, 256
        %v741 = vpop.permute.xlu0 %740
        %v742 = vsub.f32 %v438, %v692
        %v743 = vsub.f32 %v439, %v699
        %v744 = vsub.f32 %v440, %v706
        %v745 = vsub.f32 %v441, %v713
        %v746 = vsub.f32 %v442, %v720
        %v747 = vsub.f32 %v443, %v727
        %v748 = vsub.f32 %v444, %v734
        %v749 = vsub.f32 %v445, %v741
        %v750 = vmul.f32 %v742, 1.442695
        %v751 = vpow.pop %v750
        %v752 = vmul.f32 %v743, 1.442695
        %v753 = vpow.pop %v752
        %v754 = vmul.f32 %v744, 1.442695
        %v755 = vpow.pop %v754
        %v756 = vmul.f32 %v745, 1.442695
        %v757 = vpow.pop %v756
        %v758 = vmul.f32 %v746, 1.442695
        %v759 = vpow.pop %v758
        %v760 = vmul.f32 %v747, 1.442695
        %v761 = vpow.pop %v760
        %v762 = vmul.f32 %v748, 1.442695
        %v763 = vpow.pop %v762
        %v764 = vmul.f32 %v749, 1.442695
        %v765 = vpow.pop %v764
        %766 = vadd.xlane.f32.xlu0 %v751
        %v767 = vpop.xlane.xlu0 %766
        %768 = vadd.xlane.f32.xlu0 %v753
        %v769 = vpop.xlane.xlu0 %768
        %770 = vadd.xlane.f32.xlu0 %v755
        %v771 = vpop.xlane.xlu0 %770
        %772 = vadd.xlane.f32.xlu0 %v757
        %v773 = vpop.xlane.xlu0 %772
        %774 = vadd.xlane.f32.xlu0 %v759
        %v775 = vpop.xlane.xlu0 %774
        %776 = vadd.xlane.f32.xlu0 %v761
        %v777 = vpop.xlane.xlu0 %776
        %778 = vadd.xlane.f32.xlu0 %v763
        %v779 = vpop.xlane.xlu0 %778
        %780 = vadd.xlane.f32.xlu0 %v765
        %v781 = vpop.xlane.xlu0 %780
        %v790 = vlaneseq
        %v791 = vshrl.u32 %v790, 7
        %v792 = vsub.s32 %v329, %v791
        %v793 = vrot.slane %v767, %v792
        %v794 = vlaneseq
        %v795 = vshrl.u32 %v794, 7
        %v796 = vsub.s32 %v329, %v795
        %v797 = vrot.slane %v769, %v796
        %v798 = vlaneseq
        %v799 = vshrl.u32 %v798, 7
        %v800 = vsub.s32 %v329, %v799
        %v801 = vrot.slane %v771, %v800
        %v802 = vlaneseq
        %v803 = vshrl.u32 %v802, 7
        %v804 = vsub.s32 %v329, %v803
        %v805 = vrot.slane %v773, %v804
        %v806 = vlaneseq
        %v807 = vshrl.u32 %v806, 7
        %v808 = vsub.s32 %v329, %v807
        %v809 = vrot.slane %v775, %v808
        %v810 = vlaneseq
        %v811 = vshrl.u32 %v810, 7
        %v812 = vsub.s32 %v329, %v811
        %v813 = vrot.slane %v777, %v812
        %v814 = vlaneseq
        %v815 = vshrl.u32 %v814, 7
        %v816 = vsub.s32 %v329, %v815
        %v817 = vrot.slane %v779, %v816
        %v818 = vlaneseq
        %v819 = vshrl.u32 %v818, 7
        %v820 = vsub.s32 %v329, %v819
        %v821 = vrot.slane %v781, %v820
        %v822 = vsel %vm664, %v797, %v793
        %v823 = vsel %vm666, %v801, %v822
        %v824 = vsel %vm668, %v805, %v823
        %v825 = vsel %vm670, %v809, %v824
        %v826 = vsel %vm672, %v813, %v825
        %v827 = vsel %vm674, %v817, %v826
        %v828 = vsel %vm676, %v821, %v827
        %v830 = vadd.f32 %v685, %v828
        %vm831 = vcmask 64512
        %832 = vst.msk [vmem:[%s622] sm:$0xff] %vm831, %v679
        %833 = vst.msk [vmem:[%s680] sm:$0xff] %vm831, %v830
        %s834 = scalar_lea.vmem [#allocation4], %s621
        %v835 = vld [vmem:[%s834] sm:$0xff]
        %844 = vset.pattern.permute.xlu0 0
        %845 = vperm.xlu0 %844, %v601
        %v846 = vpop.permute.xlu0 %845
        %847 = vset.pattern.permute.xlu0 0
        %848 = vperm.xlu0 %847, %v602
        %v849 = vpop.permute.xlu0 %848
        %850 = vset.pattern.permute.xlu0 0
        %851 = vperm.xlu0 %850, %v603
        %v852 = vpop.permute.xlu0 %851
        %853 = vset.pattern.permute.xlu0 0
        %854 = vperm.xlu0 %853, %v604
        %v855 = vpop.permute.xlu0 %854
        %856 = vset.pattern.permute.xlu0 0
        %857 = vperm.xlu0 %856, %v605
        %v858 = vpop.permute.xlu0 %857
        %859 = vset.pattern.permute.xlu0 0
        %860 = vperm.xlu0 %859, %v606
        %v861 = vpop.permute.xlu0 %860
        %862 = vset.pattern.permute.xlu0 0
        %863 = vperm.xlu0 %862, %v607
        %v864 = vpop.permute.xlu0 %863
        %865 = vset.pattern.permute.xlu0 0
        %866 = vperm.xlu0 %865, %v608
        %v867 = vpop.permute.xlu0 %866
        %v868 = vlaneseq
        %v869 = vshrl.u32 %v868, 7
        %v870 = vsub.s32 %v329, %v869
        %v871 = vrot.slane %v846, %v870
        %v872 = vlaneseq
        %v873 = vshrl.u32 %v872, 7
        %v874 = vsub.s32 %v329, %v873
        %v875 = vrot.slane %v849, %v874
        %v876 = vlaneseq
        %v877 = vshrl.u32 %v876, 7
        %v878 = vsub.s32 %v329, %v877
        %v879 = vrot.slane %v852, %v878
        %v880 = vlaneseq
        %v881 = vshrl.u32 %v880, 7
        %v882 = vsub.s32 %v329, %v881
        %v883 = vrot.slane %v855, %v882
        %v884 = vlaneseq
        %v885 = vshrl.u32 %v884, 7
        %v886 = vsub.s32 %v329, %v885
        %v887 = vrot.slane %v858, %v886
        %v888 = vlaneseq
        %v889 = vshrl.u32 %v888, 7
        %v890 = vsub.s32 %v329, %v889
        %v891 = vrot.slane %v861, %v890
        %v892 = vlaneseq
        %v893 = vshrl.u32 %v892, 7
        %v894 = vsub.s32 %v329, %v893
        %v895 = vrot.slane %v864, %v894
        %v896 = vlaneseq
        %v897 = vshrl.u32 %v896, 7
        %v898 = vsub.s32 %v329, %v897
        %v899 = vrot.slane %v867, %v898
        %v900 = vsel %vm664, %v875, %v871
        %v901 = vsel %vm666, %v879, %v900
        %v902 = vsel %vm668, %v883, %v901
        %v903 = vsel %vm670, %v887, %v902
        %v904 = vsel %vm672, %v891, %v903
        %v905 = vsel %vm674, %v895, %v904
        %v906 = vsel %vm676, %v899, %v905
        %v908 = vadd.f32 %v835, %v906
        %909 = vst.msk [vmem:[%s834] sm:$0xff] %vm831, %v908
        %p910 = scmp.eq.s32.totalorder %s28, 2
        %p911 = scmp.eq.s32.totalorder %s29, 0
        %p912 = pnand %p910, %p911
        %p913 = pneg %p912
        // Predicated region
        $region53: #{tpu_custom_call.1} parent=35 // pred_check
          _
        $region54: #{tpu_custom_call.1} parent=35 // pred_check_branch
          %915 = sbr.rel (%p912) target = $region56
        $region55: #{tpu_custom_call.1} parent=35 // pred_region
          %vm916 = vcmask 57344
          %917 = vst.msk [vmem:[#allocation11] sm:$0x1] %vm916, 0.0
        $region56: #{tpu_custom_call.1} parent=35 // pred_fallthru
          _
        // Predicated region
        $region57: #{tpu_custom_call.1} parent=35 // pred_check
          %p918 = pneg %p910
        $region58: #{tpu_custom_call.1} parent=35 // pred_check_branch
          %920 = sbr.rel (%p918) target = $region60
        $region59: #{tpu_custom_call.1} parent=35 // pred_region
          %v921 = vld [vmem:[%s622] sm:$0xff]
          %v922 = vld [vmem:[%s680] sm:$0xff]
          %v923 = vlog2.pop %v922
          %v924 = vmul.f32 %v923, 0.6931472
          %v925 = vadd.f32 %v921, %v924
          %v926 = vld [vmem:[%s834] sm:$0xff]
          %v927 = vsub.f32 %v925, %v926
          %v928 = vlaneseq
          %v929 = vshrl.u32 %v928, 7
          %v930 = vstv %s621
          %v931 = vadd.s32 %v929, %v930
          %vm932 = vcmp.lt.s32.totalorder %v931, 12
          %v933 = vsel %vm932, %v927, 0.0
          %v934 = vld [vmem:[#allocation11] sm:$0x1]
          %v935 = vsel %vm831, %v933, 0.0
          %v936 = vrot.slane %v935, 4
          %v937 = vadd.f32 %v935, %v936
          %v938 = vrot.slane %v937, 2
          %v939 = vadd.f32 %v937, %v938
          %v940 = vrot.slane %v939, 1
          %v941 = vadd.f32 %v939, %v940
          %v942 = vadd.f32 %v934, %v941
          %p943 = scmp.eq.s32.totalorder %s29, 1
          %v944 = vmul.f32 %v942, 0.083333336
          %s945 = scalar_select %p943, 1, 0
          %v946 = vstv %s945
          %vm947 = vcmp.eq.s32.totalorder %v946, 1
          %v948 = vsel %vm947, %v944, %v942
          %vm949 = vcmask 57344
          %950 = vst.msk [vmem:[#allocation11] sm:$0x1] %vm949, %v948
        $region60: #{tpu_custom_call.1} parent=35 // pred_fallthru
          _
        // Predicated region
        $region61: #{tpu_custom_call.1} parent=35 // pred_check
          %p951 = pneg %p169
        $region62: #{tpu_custom_call.1} parent=35 // pred_check_branch
          %953 = sbr.rel (%p951) target = $region64
        $region63: #{tpu_custom_call.1} parent=35 // pred_region
          %s955 = ssub.s32 16, 16
          %956 = vsyncadd [#allocation7], %s955
          %s957 = smul.addr %s27, 16
          %s958 = scalar_lea.hbm %s4, %s957
          %s960 = sshll.u32 [#allocation11], 4
          %s961 = int_to_ptr.vmem [resolvable:$true] %s960
          %963 = dma.vmem_to_hbm [thread:$0]  %s961, 16, %s958, [#allocation7]
        $region64: #{tpu_custom_call.1} parent=35 // pred_fallthru
          _
        // Predicated region
        $region65: #{tpu_custom_call.1} parent=35 // pred_check
          %p964 = pneg %p169
        $region66: #{tpu_custom_call.1} parent=35 // pred_check_branch
          %966 = sbr.rel (%p964) target = $region68
        $region67: #{tpu_custom_call.1} parent=35 // pred_region
          %967 = dma.done [#allocation7], 16
        $region68: #{tpu_custom_call.1} parent=35 // pred_fallthru
          _
      $region36: #{tpu_custom_call.1} parent=5 // pred_fallthru
        _
      %p968 = scmp.le.s32.totalorder 2, %s17
      // Predicated region
      $region69: #{tpu_custom_call.1} parent=5 // pred_check
        %p969 = pneg %p968
      $region70: #{tpu_custom_call.1} parent=5 // pred_check_branch
        %971 = sbr.rel (%p969) target = $region72
      $region71: #{tpu_custom_call.1} parent=5 // pred_region
        %s972 = ssub.s32 %s17, 2
      $region72: #{tpu_custom_call.1} parent=5 // pred_fallthru
        _
    $region6: #{tpu_custom_call.1} parent=1 // loop_footer
      %s21 = sadd.s32 1, %s17
    $region7: #{tpu_custom_call.1} parent=1 // loop_footer_branch
      %16 = sbr.rel target = $region3
    $region8: #{tpu_custom_call.1} parent=1 // loop_exit
      _
    %973 = vsyncpa [#allocation6], 1
    %s974 = scalar_lea.sflag [#allocation6], 1
    %975 = vsyncpa %s974, 1
    %976 = vsyncpa [#allocation9], 1
    %s977 = scalar_lea.sflag [#allocation9], 1
    %978 = vsyncpa %s977, 1
    %979 = vsyncpa [#allocation7], 1
    %s980 = scalar_lea.sflag [#allocation7], 1
    %981 = vsyncpa %s980, 1

</llo_original>
